<compile_context>
chip_gen: v7x
topology: tpu7x:2x2x1
jax: 0.10.0
libtpu: 0.0.40
codegen_flags: <defaults>
</compile_context>

<pallas_src>
import functools

import jax
import jax.numpy as jnp
from jax import lax
from jax.experimental import pallas as pl
from jax.experimental.pallas import tpu as pltpu

EPS = 1e-5  # PyTorch nn.LayerNorm default eps


def _layernorm(x, gamma, beta):
    mu = jnp.mean(x, axis=-1, keepdims=True)
    var = jnp.mean((x - mu) ** 2, axis=-1, keepdims=True)
    return (x - mu) * lax.rsqrt(var + EPS) * gamma + beta


def _row_tile(total, preferred=(512, 256, 128, 64, 32, 16, 8)):
    """Row tile satisfying the (8,128) block rule: either the full extent or a
    multiple of 8 that divides it (so no partial-tile masking is needed).
    256-512 fills v6e/v7x 256x256 MXU; 128 multiples suit v5e."""
    if total <= preferred[0]:
        return total
    for t in preferred:
        if total % t == 0:
            return t
    return total


def patch_embed_pool_kernel(patches_ref, ln1_g_ref, ln1_b_ref, w1_ref, b1_ref,
                            ln2_g_ref, ln2_b_ref, pos_ref, pool_ref, *, n_patches):
    r = pl.program_id(1)

    x = patches_ref[0].astype(jnp.float32)                  # (TN, patch_dim)
    x = _layernorm(x, ln1_g_ref[...], ln1_b_ref[...])       # LayerNorm(patch_dim), f32
    # bf16 MXU operands, f32 accumulation.
    y = jnp.dot(x.astype(jnp.bfloat16), w1_ref[...],
                preferred_element_type=jnp.float32) + b1_ref[...]   # Linear(patch_dim, dim)
    y = _layernorm(y, ln2_g_ref[...], ln2_b_ref[...])       # LayerNorm(dim), f32
    y = y + pos_ref[...]                                    # + pos_embedding[:, :n]

    # TODO(synk): `transformer` is an externally supplied module in the PyTorch
    # code; it is treated as identity here, so the mean pool over patches is
    # fused into this kernel (VMEM-resident per-batch accumulator output).
    @pl.when(r == 0)
    def _():
        pool_ref[...] = jnp.zeros_like(pool_ref)

    pool_ref[0] = pool_ref[0] + jnp.sum(y, axis=0, keepdims=True)

    @pl.when(r == pl.num_programs(1) - 1)
    def _():
        pool_ref[...] = pool_ref[...] * (1.0 / n_patches)    # finalize mean


def head_kernel(m_ref, ln_g_ref, ln_b_ref, w_ref, b_ref, out_ref):
    m = m_ref[...].astype(jnp.float32)                       # (TB, dim)
    m = _layernorm(m, ln_g_ref[...], ln_b_ref[...])          # LayerNorm(dim)
    out_ref[...] = jnp.dot(m.astype(jnp.bfloat16), w_ref[...],
                           preferred_element_type=jnp.float32) + b_ref[...]


def init_params(key, *, image_size, patch_size, num_classes, dim, channels):
    h = image_size // patch_size
    num_patches = h * h
    patch_dim = channels * patch_size * patch_size
    k1, k2, k3, _ = jax.random.split(key, 4)
    return {
        "patch_size": patch_size,
        # LayerNorm(patch_dim): PyTorch default init
        "ln1_g": jnp.ones((1, patch_dim), jnp.float32),
        "ln1_b": jnp.zeros((1, patch_dim), jnp.float32),
        # Linear(patch_dim, dim) stored as (in, out) so kernel computes x @ W
        "w1": jax.random.normal(k1, (patch_dim, dim), jnp.float32) * 0.02,
        "b1": jnp.zeros((1, dim), jnp.float32),
        # LayerNorm(dim)
        "ln2_g": jnp.ones((1, dim), jnp.float32),
        "ln2_b": jnp.zeros((1, dim), jnp.float32),
        # pos_embedding ~ randn(1, num_patches, dim)
        "pos_embedding": jax.random.normal(k2, (1, num_patches, dim), jnp.float32),
        # mlp_head: LayerNorm(dim) + Linear(dim, num_classes)
        "ln3_g": jnp.ones((1, dim), jnp.float32),
        "ln3_b": jnp.zeros((1, dim), jnp.float32),
        "w_head": jax.random.normal(k3, (dim, num_classes), jnp.float32) * 0.02,
        "b_head": jnp.zeros((1, num_classes), jnp.float32),
    }


def vit_for_reformer_forward(img, params):
    B, C, H, W = img.shape
    p = params["patch_size"]
    h, w = H // p, W // p
    n = h * w
    patch_dim = C * p * p
    dim = params["w1"].shape[1]
    num_classes = params["w_head"].shape[1]

    # Rearrange 'b c (h p1) (w p2) -> b (h w) (p1 p2 c)'  (JAX glue)
    x = img.reshape(B, C, h, p, w, p)
    x = jnp.transpose(x, (0, 2, 4, 3, 5, 1))        # b h w p1 p2 c
    patches = x.reshape(B, n, patch_dim)

    pos = params["pos_embedding"][0]                # (n, dim) — reused across batch
    w1_bf16 = params["w1"].astype(jnp.bfloat16)

    tn = _row_tile(n)
    nr = n // tn

    const = lambda shape: pl.BlockSpec(shape, lambda b, r: (0, 0))

    pooled = pl.pallas_call(
        functools.partial(patch_embed_pool_kernel, n_patches=n),
        out_shape=jax.ShapeDtypeStruct((B, 1, dim), jnp.float32),
        grid=(B, nr),
        in_specs=[
            pl.BlockSpec((1, tn, patch_dim), lambda b, r: (b, r, 0)),   # patches tile
            const((1, patch_dim)),                                      # ln1_g (resident)
            const((1, patch_dim)),                                      # ln1_b
            const((patch_dim, dim)),                                    # w1 (bf16, resident)
            const((1, dim)),                                            # b1
            const((1, dim)),                                            # ln2_g
            const((1, dim)),                                            # ln2_b
            pl.BlockSpec((tn, dim), lambda b, r: (r, 0)),               # pos (n, dim)
        ],
        out_specs=pl.BlockSpec((1, 1, dim), lambda b, r: (b, 0, 0)),    # per-batch accumulator
        compiler_params=pltpu.CompilerParams(
            dimension_semantics=("parallel", "arbitrary"),
            vmem_limit_bytes=32 * 1024 * 1024),
    )(patches,
      params["ln1_g"], params["ln1_b"],
      w1_bf16, params["b1"],
      params["ln2_g"], params["ln2_b"],
      pos)

    pooled = pooled.reshape(B, dim)

    # Lane-dense head output: pad classes up to a multiple of 128, slice after.
    c_pad = ((num_classes + 127) // 128) * 128
    w_head = jnp.pad(params["w_head"],
                     ((0, 0), (0, c_pad - num_classes))).astype(jnp.bfloat16)
    b_head = jnp.pad(params["b_head"], ((0, 0), (0, c_pad - num_classes)))

    tb = _row_tile(B)
    logits = pl.pallas_call(
        head_kernel,
        out_shape=jax.ShapeDtypeStruct((B, c_pad), jnp.float32),
        grid=(B // tb,),
        in_specs=[
            pl.BlockSpec((tb, dim), lambda i: (i, 0)),      # pooled tile
            pl.BlockSpec((1, dim), lambda i: (0, 0)),       # ln3_g
            pl.BlockSpec((1, dim), lambda i: (0, 0)),       # ln3_b
            pl.BlockSpec((dim, c_pad), lambda i: (0, 0)),   # w_head (bf16, padded)
            pl.BlockSpec((1, c_pad), lambda i: (0, 0)),     # b_head (padded)
        ],
        out_specs=pl.BlockSpec((tb, c_pad), lambda i: (i, 0)),
        compiler_params=pltpu.CompilerParams(
            dimension_semantics=("parallel",),
            vmem_limit_bytes=32 * 1024 * 1024),
    )(pooled, params["ln3_g"], params["ln3_b"], w_head, b_head)

    return logits[:, :num_classes]


def reference_forward(img, params):
    """Pure-JAX f32 reference for numerical checking."""
    B, C, H, W = img.shape
    p = params["patch_size"]
    h, w = H // p, W // p
    n = h * w
    patch_dim = C * p * p

    def ln(v, g, b_):
        mu = v.mean(-1, keepdims=True)
        var = ((v - mu) ** 2).mean(-1, keepdims=True)
        return (v - mu) / jnp.sqrt(var + EPS) * g + b_

    x = img.reshape(B, C, h, p, w, p).transpose(0, 2, 4, 3, 5, 1).reshape(B, n, patch_dim)
    x = ln(x, params["ln1_g"][0], params["ln1_b"][0])
    x = x @ params["w1"] + params["b1"][0]
    x = ln(x, params["ln2_g"][0], params["ln2_b"][0])
    x = x + params["pos_embedding"]
    # transformer = identity
    m = x.mean(axis=1)
    m = ln(m, params["ln3_g"][0], params["ln3_b"][0])
    return m @ params["w_head"] + params["b_head"][0]


if __name__ == "__main__":
    key = jax.random.PRNGKey(0)
    k_img, k_params = jax.random.split(key)

    # Small ViT config: image 16x16, patch 8 -> 4 patches, patch_dim = 3*64 = 192
    image_size = 16
    patch_size = 8
    channels = 3
    dim = 32
    num_classes = 10
    batch = 2

    img = jax.random.normal(k_img, (batch, channels, image_size, image_size), jnp.float32)
    params = init_params(k_params,
                         image_size=image_size, patch_size=patch_size,
                         num_classes=num_classes, dim=dim, channels=channels)

    out = vit_for_reformer_forward(img, params)
    out = jax.block_until_ready(out)
    assert out.shape == (batch, num_classes), out.shape

    ref = reference_forward(img, params)
    assert bool(jnp.allclose(out, ref, atol=5e-2, rtol=5e-2)), "mismatch vs reference"

    print("KERNEL_OK")
</pallas_src>

<mosaic_0001>
module attributes {stable_mosaic.version = 11 : i64} {
  func.func @patch_embed_pool_kernel(%arg0: i32, %arg1: i32, %arg2: memref<1x4x192xf32, #tpu.memory_space<vmem>>, %arg3: memref<1x192xf32, #tpu.memory_space<vmem>>, %arg4: memref<1x192xf32, #tpu.memory_space<vmem>>, %arg5: memref<192x32xbf16, #tpu.memory_space<vmem>>, %arg6: memref<1x32xf32, #tpu.memory_space<vmem>>, %arg7: memref<1x32xf32, #tpu.memory_space<vmem>>, %arg8: memref<1x32xf32, #tpu.memory_space<vmem>>, %arg9: memref<4x32xf32, #tpu.memory_space<vmem>>, %arg10: memref<1x1x32xf32, #tpu.memory_space<vmem>>) attributes {dimension_semantics = [#tpu.dimension_semantics<parallel>, #tpu.dimension_semantics<arbitrary>], iteration_bounds = array<i64: 2, 1>, scalar_prefetch = 0 : i64, scratch_operands = 0 : i64, tpu.core_type = #tpu.core_type<tc>, window_params = [{transform_indices = @transform_0, window_bounds = array<i64: 1, 4, 192>}, {pipeline_mode = #tpu.pipeline_mode<synchronous>, transform_indices = @transform_1, window_bounds = array<i64: 1, 192>}, {pipeline_mode = #tpu.pipeline_mode<synchronous>, transform_indices = @transform_2, window_bounds = array<i64: 1, 192>}, {pipeline_mode = #tpu.pipeline_mode<synchronous>, transform_indices = @transform_3, window_bounds = array<i64: 192, 32>}, {pipeline_mode = #tpu.pipeline_mode<synchronous>, transform_indices = @transform_4, window_bounds = array<i64: 1, 32>}, {pipeline_mode = #tpu.pipeline_mode<synchronous>, transform_indices = @transform_5, window_bounds = array<i64: 1, 32>}, {pipeline_mode = #tpu.pipeline_mode<synchronous>, transform_indices = @transform_6, window_bounds = array<i64: 1, 32>}, {transform_indices = @transform_7, window_bounds = array<i64: 4, 32>}, {transform_indices = @transform_8, window_bounds = array<i64: 1, 1, 32>}]} {
    %c0 = arith.constant 0 : index
    %c0_0 = arith.constant 0 : index
    %c0_1 = arith.constant 0 : index
    %0 = vector.load %arg2[%c0, %c0_0, %c0_1] : memref<1x4x192xf32, #tpu.memory_space<vmem>>, vector<1x4x192xf32>
    %1 = vector.shape_cast %0 : vector<1x4x192xf32> to vector<4x192xf32>
    %c0_2 = arith.constant 0 : index
    %c0_3 = arith.constant 0 : index
    %2 = vector.load %arg3[%c0_2, %c0_3] : memref<1x192xf32, #tpu.memory_space<vmem>>, vector<1x192xf32>
    %c0_4 = arith.constant 0 : index
    %c0_5 = arith.constant 0 : index
    %3 = vector.load %arg4[%c0_4, %c0_5] : memref<1x192xf32, #tpu.memory_space<vmem>>, vector<1x192xf32>
    %cst = arith.constant dense<0.000000e+00> : vector<4xf32>
    %4 = vector.multi_reduction <add>, %1, %cst [1] : vector<4x192xf32> to vector<4xf32>
    %5 = vector.shape_cast %4 : vector<4xf32> to vector<4x1xf32>
    %cst_6 = arith.constant 1.920000e+02 : f32
    %6 = vector.broadcast %cst_6 : f32 to vector<4x1xf32>
    %7 = arith.divf %5, %6 : vector<4x1xf32>
    %8 = vector.broadcast %7 : vector<4x1xf32> to vector<4x192xf32>
    %9 = arith.subf %1, %8 : vector<4x192xf32>
    %10 = arith.mulf %9, %9 : vector<4x192xf32>
    %cst_7 = arith.constant dense<0.000000e+00> : vector<4xf32>
    %11 = vector.multi_reduction <add>, %10, %cst_7 [1] : vector<4x192xf32> to vector<4xf32>
    %12 = vector.shape_cast %11 : vector<4xf32> to vector<4x1xf32>
    %cst_8 = arith.constant 1.920000e+02 : f32
    %13 = vector.broadcast %cst_8 : f32 to vector<4x1xf32>
    %14 = arith.divf %12, %13 : vector<4x1xf32>
    %15 = vector.broadcast %7 : vector<4x1xf32> to vector<4x192xf32>
    %16 = arith.subf %1, %15 : vector<4x192xf32>
    %cst_9 = arith.constant 9.99999974E-6 : f32
    %17 = vector.broadcast %cst_9 : f32 to vector<4x1xf32>
    %18 = arith.addf %14, %17 : vector<4x1xf32>
    %19 = math.rsqrt %18 : vector<4x1xf32>
    %20 = vector.broadcast %19 : vector<4x1xf32> to vector<4x192xf32>
    %21 = arith.mulf %16, %20 : vector<4x192xf32>
    %22 = vector.broadcast %2 : vector<1x192xf32> to vector<4x192xf32>
    %23 = arith.mulf %21, %22 : vector<4x192xf32>
    %24 = vector.broadcast %3 : vector<1x192xf32> to vector<4x192xf32>
    %25 = arith.addf %23, %24 : vector<4x192xf32>
    %26 = arith.truncf %25 : vector<4x192xf32> to vector<4x192xbf16>
    %c0_10 = arith.constant 0 : index
    %c0_11 = arith.constant 0 : index
    %27 = vector.load %arg5[%c0_10, %c0_11] : memref<192x32xbf16, #tpu.memory_space<vmem>>, vector<192x32xbf16>
    %cst_12 = arith.constant dense<0.000000e+00> : vector<4x32xf32>
    %28 = tpu.matmul %26, %27, %cst_12 {dimension_numbers = #tpu.dot_dimension_numbers<[1], [0], [0], [1], [0, 0, 1, 1], [], []>} : vector<4x192xbf16>, vector<192x32xbf16>, vector<4x32xf32> -> vector<4x32xf32>
    %c0_13 = arith.constant 0 : index
    %c0_14 = arith.constant 0 : index
    %29 = vector.load %arg6[%c0_13, %c0_14] : memref<1x32xf32, #tpu.memory_space<vmem>>, vector<1x32xf32>
    %30 = vector.broadcast %29 : vector<1x32xf32> to vector<4x32xf32>
    %31 = arith.addf %28, %30 : vector<4x32xf32>
    %c0_15 = arith.constant 0 : index
    %c0_16 = arith.constant 0 : index
    %32 = vector.load %arg7[%c0_15, %c0_16] : memref<1x32xf32, #tpu.memory_space<vmem>>, vector<1x32xf32>
    %c0_17 = arith.constant 0 : index
    %c0_18 = arith.constant 0 : index
    %33 = vector.load %arg8[%c0_17, %c0_18] : memref<1x32xf32, #tpu.memory_space<vmem>>, vector<1x32xf32>
    %cst_19 = arith.constant dense<0.000000e+00> : vector<4xf32>
    %34 = vector.multi_reduction <add>, %31, %cst_19 [1] : vector<4x32xf32> to vector<4xf32>
    %35 = vector.shape_cast %34 : vector<4xf32> to vector<4x1xf32>
    %cst_20 = arith.constant 3.200000e+01 : f32
    %36 = vector.broadcast %cst_20 : f32 to vector<4x1xf32>
    %37 = arith.divf %35, %36 : vector<4x1xf32>
    %38 = vector.broadcast %37 : vector<4x1xf32> to vector<4x32xf32>
    %39 = arith.subf %31, %38 : vector<4x32xf32>
    %40 = arith.mulf %39, %39 : vector<4x32xf32>
    %cst_21 = arith.constant dense<0.000000e+00> : vector<4xf32>
    %41 = vector.multi_reduction <add>, %40, %cst_21 [1] : vector<4x32xf32> to vector<4xf32>
    %42 = vector.shape_cast %41 : vector<4xf32> to vector<4x1xf32>
    %cst_22 = arith.constant 3.200000e+01 : f32
    %43 = vector.broadcast %cst_22 : f32 to vector<4x1xf32>
    %44 = arith.divf %42, %43 : vector<4x1xf32>
    %45 = vector.broadcast %37 : vector<4x1xf32> to vector<4x32xf32>
    %46 = arith.subf %31, %45 : vector<4x32xf32>
    %cst_23 = arith.constant 9.99999974E-6 : f32
    %47 = vector.broadcast %cst_23 : f32 to vector<4x1xf32>
    %48 = arith.addf %44, %47 : vector<4x1xf32>
    %49 = math.rsqrt %48 : vector<4x1xf32>
    %50 = vector.broadcast %49 : vector<4x1xf32> to vector<4x32xf32>
    %51 = arith.mulf %46, %50 : vector<4x32xf32>
    %52 = vector.broadcast %32 : vector<1x32xf32> to vector<4x32xf32>
    %53 = arith.mulf %51, %52 : vector<4x32xf32>
    %54 = vector.broadcast %33 : vector<1x32xf32> to vector<4x32xf32>
    %55 = arith.addf %53, %54 : vector<4x32xf32>
    %c0_24 = arith.constant 0 : index
    %c0_25 = arith.constant 0 : index
    %56 = vector.load %arg9[%c0_24, %c0_25] : memref<4x32xf32, #tpu.memory_space<vmem>>, vector<4x32xf32>
    %57 = arith.addf %55, %56 : vector<4x32xf32>
    %c0_i32 = arith.constant 0 : i32
    %58 = arith.cmpi eq, %arg1, %c0_i32 : i32
    %59 = arith.extui %58 : i1 to i32
    %c0_i32_26 = arith.constant 0 : i32
    %60 = arith.cmpi ne, %59, %c0_i32_26 : i32
    scf.if %60 {
      %cst_36 = arith.constant 0.000000e+00 : f32
      %72 = vector.broadcast %cst_36 : f32 to vector<1x1x32xf32>
      %c0_37 = arith.constant 0 : index
      %c0_38 = arith.constant 0 : index
      %c0_39 = arith.constant 0 : index
      %73 = vector.load %arg10[%c0_37, %c0_38, %c0_39] : memref<1x1x32xf32, #tpu.memory_space<vmem>>, vector<1x1x32xf32>
      tpu.vector_store %arg10[%c0_37, %c0_38, %c0_39], %72 {strides = array<i32>} : memref<1x1x32xf32, #tpu.memory_space<vmem>>, vector<1x1x32xf32>,
    } else {
    }
    %c0_27 = arith.constant 0 : index
    %c0_28 = arith.constant 0 : index
    %c0_29 = arith.constant 0 : index
    %61 = vector.load %arg10[%c0_27, %c0_28, %c0_29] : memref<1x1x32xf32, #tpu.memory_space<vmem>>, vector<1x1x32xf32>
    %62 = vector.shape_cast %61 : vector<1x1x32xf32> to vector<1x32xf32>
    %cst_30 = arith.constant dense<0.000000e+00> : vector<32xf32>
    %63 = vector.multi_reduction <add>, %57, %cst_30 [0] : vector<4x32xf32> to vector<32xf32>
    %64 = vector.shape_cast %63 : vector<32xf32> to vector<1x32xf32>
    %65 = arith.addf %62, %64 : vector<1x32xf32>
    %c0_31 = arith.constant 0 : index
    %c0_32 = arith.constant 0 : index
    %c0_33 = arith.constant 0 : index
    %66 = vector.load %arg10[%c0_31, %c0_32, %c0_33] : memref<1x1x32xf32, #tpu.memory_space<vmem>>, vector<1x1x32xf32>
    %67 = vector.shape_cast %66 : vector<1x1x32xf32> to vector<1x32xf32>
    %68 = vector.shape_cast %65 : vector<1x32xf32> to vector<1x1x32xf32>
    tpu.vector_store %arg10[%c0_31, %c0_32, %c0_33], %68 {strides = array<i32>} : memref<1x1x32xf32, #tpu.memory_space<vmem>>, vector<1x1x32xf32>,
    %c0_i32_34 = arith.constant 0 : i32
    %69 = arith.cmpi eq, %arg1, %c0_i32_34 : i32
    %70 = arith.extui %69 : i1 to i32
    %c0_i32_35 = arith.constant 0 : i32
    %71 = arith.cmpi ne, %70, %c0_i32_35 : i32
    scf.if %71 {
      %c0_36 = arith.constant 0 : index
      %c0_37 = arith.constant 0 : index
      %c0_38 = arith.constant 0 : index
      %72 = vector.load %arg10[%c0_36, %c0_37, %c0_38] : memref<1x1x32xf32, #tpu.memory_space<vmem>>, vector<1x1x32xf32>
      %cst_39 = arith.constant 2.500000e-01 : f32
      %73 = vector.broadcast %cst_39 : f32 to vector<1x1x32xf32>
      %74 = arith.mulf %72, %73 : vector<1x1x32xf32>
      %c0_40 = arith.constant 0 : index
      %c0_41 = arith.constant 0 : index
      %c0_42 = arith.constant 0 : index
      %75 = vector.load %arg10[%c0_40, %c0_41, %c0_42] : memref<1x1x32xf32, #tpu.memory_space<vmem>>, vector<1x1x32xf32>
      tpu.vector_store %arg10[%c0_40, %c0_41, %c0_42], %74 {strides = array<i32>} : memref<1x1x32xf32, #tpu.memory_space<vmem>>, vector<1x1x32xf32>,
    } else {
    }
    return
  }
  func.func @transform_0(%arg0: i32, %arg1: i32) -> (i32, i32, i32) {
    %c0_i32 = arith.constant 0 : i32
    %c0_i32_0 = arith.constant 0 : i32
    return %arg0, %arg1, %c0_i32 : i32, i32, i32
  }
  func.func @transform_1(%arg0: i32, %arg1: i32) -> (i32, i32) {
    %c0_i32 = arith.constant 0 : i32
    %c0_i32_0 = arith.constant 0 : i32
    %c0_i32_1 = arith.constant 0 : i32
    return %c0_i32, %c0_i32_0 : i32, i32
  }
  func.func @transform_2(%arg0: i32, %arg1: i32) -> (i32, i32) {
    %c0_i32 = arith.constant 0 : i32
    %c0_i32_0 = arith.constant 0 : i32
    %c0_i32_1 = arith.constant 0 : i32
    return %c0_i32, %c0_i32_0 : i32, i32
  }
  func.func @transform_3(%arg0: i32, %arg1: i32) -> (i32, i32) {
    %c0_i32 = arith.constant 0 : i32
    %c0_i32_0 = arith.constant 0 : i32
    %c0_i32_1 = arith.constant 0 : i32
    return %c0_i32, %c0_i32_0 : i32, i32
  }
  func.func @transform_4(%arg0: i32, %arg1: i32) -> (i32, i32) {
    %c0_i32 = arith.constant 0 : i32
    %c0_i32_0 = arith.constant 0 : i32
    %c0_i32_1 = arith.constant 0 : i32
    return %c0_i32, %c0_i32_0 : i32, i32
  }
  func.func @transform_5(%arg0: i32, %arg1: i32) -> (i32, i32) {
    %c0_i32 = arith.constant 0 : i32
    %c0_i32_0 = arith.constant 0 : i32
    %c0_i32_1 = arith.constant 0 : i32
    return %c0_i32, %c0_i32_0 : i32, i32
  }
  func.func @transform_6(%arg0: i32, %arg1: i32) -> (i32, i32) {
    %c0_i32 = arith.constant 0 : i32
    %c0_i32_0 = arith.constant 0 : i32
    %c0_i32_1 = arith.constant 0 : i32
    return %c0_i32, %c0_i32_0 : i32, i32
  }
  func.func @transform_7(%arg0: i32, %arg1: i32) -> (i32, i32) {
    %c0_i32 = arith.constant 0 : i32
    %c0_i32_0 = arith.constant 0 : i32
    return %arg1, %c0_i32 : i32, i32
  }
  func.func @transform_8(%arg0: i32, %arg1: i32) -> (i32, i32, i32) {
    %c0_i32 = arith.constant 0 : i32
    %c0_i32_0 = arith.constant 0 : i32
    %c0_i32_1 = arith.constant 0 : i32
    return %arg0, %c0_i32, %c0_i32_0 : i32, i32, i32
  }
}

</mosaic_0001>

<llo_original>
// kernel: tpu_custom_call.1
$region0: #{tpu_custom_call.1}
  #allocation0 [shape = 'u32[]', space=smem, size = 0x4, offset = 0x4, fixed_abs, tag = 'smem constant byte address 0x4 - core index']
  #allocation1 [shape = 'u32[144,128]{1,0:T(1,128)}', space=vmem, size = 0x12000, scoped, tag = 'internal scratch']
  %s0 = inlined_call_operand.vmem [shape: f32[2,4,192], index: 0, kind: input, shape index: {}]
  %s1 = inlined_call_operand.vmem [shape: f32[1,192], index: 1, kind: input, shape index: {}]
  %s2 = inlined_call_operand.vmem [shape: f32[1,192], index: 2, kind: input, shape index: {}]
  %s3 = inlined_call_operand.vmem [shape: bf16[192,32], index: 3, kind: input, shape index: {}]
  %s4 = inlined_call_operand.vmem [shape: f32[1,32], index: 4, kind: input, shape index: {}]
  %s5 = inlined_call_operand.vmem [shape: f32[1,32], index: 5, kind: input, shape index: {}]
  %s6 = inlined_call_operand.vmem [shape: f32[1,32], index: 6, kind: input, shape index: {}]
  %s7 = inlined_call_operand.vmem [shape: f32[4,32], index: 7, kind: input, shape index: {}]
  %s8 = inlined_call_operand.hbm [shape: f32[2,1,32], index: 8, kind: output, shape index: {}]
  %s9 = sld [smem:[#allocation0]]
  $region73: #{tpu_custom_call.1} parent=0
    _
  %s11 = ssub.s32 1, %s9
  %s12 = scalar_select 0, %s11, %s9
  $region1: #{tpu_custom_call.1} parent=0
    #allocation2 [shape = 'u8[1024]{0}', space=vmem, size = 0x400, scoped, tag = 'output window, operand 0']
    #allocation3 [shape = 's32[2]{0}', space=sflag, size = 0x8, scoped, tag = 'scoped memory for tpu_custom_call.1']
    %13 = vsyncpa [#allocation3], 0
    %s14 = scalar_lea.sflag [#allocation3], 1
    %15 = vsyncpa %s14, 0
    loop: start=0, step=1, limit=4
    $region2: #{tpu_custom_call.1} parent=1 // loop_pre_header
      _
    $region3: #{tpu_custom_call.1} parent=1 // loop_header
      %s17 = sphi 0, %s21
      %p18 = scmp.ge.s32.totalorder %s17, 4
      %s24 = sphi 0, %s36
      %s25 = sphi 0, %s32
      %s26 = sphi 0, %s24
      %s27 = sphi 0, %s25
      %s28 = sphi 0, %s26
      %s29 = sphi 0, %s27
      %s41 = sphi 0, %s43
      %s44 = sphi 0, %s41
      %s45 = sphi 0, %s44
      %s61 = sphi 0, %s45
      %s65 = sphi 0, %s65
      %s67 = sphi 0, %s65
      %s68 = sphi 0, %s67
      %s82 = sphi 0, %s68
      %s86 = sphi 0, %s86
      %s88 = sphi 0, %s86
      %s89 = sphi 0, %s88
      %s103 = sphi 0, %s89
      %s107 = sphi 0, %s107
      %s109 = sphi 0, %s107
      %s110 = sphi 0, %s109
      %s124 = sphi 0, %s110
      %s128 = sphi 0, %s128
      %s130 = sphi 0, %s128
      %s131 = sphi 0, %s130
      %s145 = sphi 0, %s131
      %s149 = sphi 0, %s149
      %s151 = sphi 0, %s149
      %s152 = sphi 0, %s151
      %s166 = sphi 0, %s152
      %s170 = sphi 0, %s170
      %s172 = sphi 0, %s170
      %s173 = sphi 0, %s172
      %s187 = sphi 0, %s173
      %s193 = sphi 0, %s195
      %s196 = sphi 0, %s193
      %s197 = sphi 0, %s196
      %s213 = sphi 0, %s197
      %s219 = sphi 0, %s221
      %s222 = sphi 0, %s219
      %s223 = sphi 0, %s222
      %s239 = sphi 0, %s223
    $region4: #{tpu_custom_call.1} parent=1 // loop_header_branch
      %20 = sbr.rel (%p18) target = $region8
    $region5: #{tpu_custom_call.1} parent=1 // loop_body
      %s22 = ssub.s32 %s17, 1
      %s23 = ssub.s32 %s17, 2
      %s30 = sadd.s32 1, %s25
      %p31 = scmp.ge.s32.totalorder %s30, 1
      %s32 = scalar_select %p31, 0, %s30
      %s33 = sadd.s32 1, %s24
      %s34 = scalar_select %p31, %s33, %s24
      %p35 = scmp.ge.s32.totalorder %s34, 2
      %s36 = scalar_select %p35, 0, %s34
      %s37 = ssub.s32 %s24, %s36
      %s38 = ssub.s32 %s25, %s32
      %s39 = sor.u32 %s37, %s38
      %p40 = scmp.eq.s32.totalorder %s39, 0
      %s42 = sadd.s32 %s41, 1
      %s43 = scalar_select %p40, %s41, %s42
      %p46 = pneg %p40
      %p47 = scmp.eq.s32.totalorder %s17, 1
      %p48 = por %p46, %p47
      %p49 = scmp.ne.s32.totalorder %s41, %s44
      %p50 = scmp.eq.s32.totalorder %s17, 0
      %p51 = por %p49, %p50
      %p52 = scmp.ne.s32.totalorder %s41, %s44
      %p53 = scmp.eq.s32.totalorder %s22, 1
      %p54 = por %p52, %p53
      %p55 = scmp.ne.s32.totalorder %s44, %s45
      %p56 = scmp.eq.s32.totalorder %s22, 0
      %p57 = por %p55, %p56
      %p58 = scmp.ne.s32.totalorder %s44, %s45
      %p59 = scmp.eq.s32.totalorder %s23, 1
      %p60 = por %p58, %p59
      %p62 = scmp.ne.s32.totalorder %s45, %s61
      %p63 = scmp.eq.s32.totalorder %s23, 0
      %p64 = por %p62, %p63
      %s66 = sadd.s32 %s65, 1
      %p69 = scmp.eq.s32.totalorder %s17, 1
      %p70 = scmp.ne.s32.totalorder %s65, %s67
      %p71 = scmp.eq.s32.totalorder %s17, 0
      %p72 = por %p70, %p71
      %p73 = scmp.ne.s32.totalorder %s65, %s67
      %p74 = scmp.eq.s32.totalorder %s22, 1
      %p75 = por %p73, %p74
      %p76 = scmp.ne.s32.totalorder %s67, %s68
      %p77 = scmp.eq.s32.totalorder %s22, 0
      %p78 = por %p76, %p77
      %p79 = scmp.ne.s32.totalorder %s67, %s68
      %p80 = scmp.eq.s32.totalorder %s23, 1
      %p81 = por %p79, %p80
      %p83 = scmp.ne.s32.totalorder %s68, %s82
      %p84 = scmp.eq.s32.totalorder %s23, 0
      %p85 = por %p83, %p84
      %s87 = sadd.s32 %s86, 1
      %p90 = scmp.eq.s32.totalorder %s17, 1
      %p91 = scmp.ne.s32.totalorder %s86, %s88
      %p92 = scmp.eq.s32.totalorder %s17, 0
      %p93 = por %p91, %p92
      %p94 = scmp.ne.s32.totalorder %s86, %s88
      %p95 = scmp.eq.s32.totalorder %s22, 1
      %p96 = por %p94, %p95
      %p97 = scmp.ne.s32.totalorder %s88, %s89
      %p98 = scmp.eq.s32.totalorder %s22, 0
      %p99 = por %p97, %p98
      %p100 = scmp.ne.s32.totalorder %s88, %s89
      %p101 = scmp.eq.s32.totalorder %s23, 1
      %p102 = por %p100, %p101
      %p104 = scmp.ne.s32.totalorder %s89, %s103
      %p105 = scmp.eq.s32.totalorder %s23, 0
      %p106 = por %p104, %p105
      %s108 = sadd.s32 %s107, 1
      %p111 = scmp.eq.s32.totalorder %s17, 1
      %p112 = scmp.ne.s32.totalorder %s107, %s109
      %p113 = scmp.eq.s32.totalorder %s17, 0
      %p114 = por %p112, %p113
      %p115 = scmp.ne.s32.totalorder %s107, %s109
      %p116 = scmp.eq.s32.totalorder %s22, 1
      %p117 = por %p115, %p116
      %p118 = scmp.ne.s32.totalorder %s109, %s110
      %p119 = scmp.eq.s32.totalorder %s22, 0
      %p120 = por %p118, %p119
      %p121 = scmp.ne.s32.totalorder %s109, %s110
      %p122 = scmp.eq.s32.totalorder %s23, 1
      %p123 = por %p121, %p122
      %p125 = scmp.ne.s32.totalorder %s110, %s124
      %p126 = scmp.eq.s32.totalorder %s23, 0
      %p127 = por %p125, %p126
      %s129 = sadd.s32 %s128, 1
      %p132 = scmp.eq.s32.totalorder %s17, 1
      %p133 = scmp.ne.s32.totalorder %s128, %s130
      %p134 = scmp.eq.s32.totalorder %s17, 0
      %p135 = por %p133, %p134
      %p136 = scmp.ne.s32.totalorder %s128, %s130
      %p137 = scmp.eq.s32.totalorder %s22, 1
      %p138 = por %p136, %p137
      %p139 = scmp.ne.s32.totalorder %s130, %s131
      %p140 = scmp.eq.s32.totalorder %s22, 0
      %p141 = por %p139, %p140
      %p142 = scmp.ne.s32.totalorder %s130, %s131
      %p143 = scmp.eq.s32.totalorder %s23, 1
      %p144 = por %p142, %p143
      %p146 = scmp.ne.s32.totalorder %s131, %s145
      %p147 = scmp.eq.s32.totalorder %s23, 0
      %p148 = por %p146, %p147
      %s150 = sadd.s32 %s149, 1
      %p153 = scmp.eq.s32.totalorder %s17, 1
      %p154 = scmp.ne.s32.totalorder %s149, %s151
      %p155 = scmp.eq.s32.totalorder %s17, 0
      %p156 = por %p154, %p155
      %p157 = scmp.ne.s32.totalorder %s149, %s151
      %p158 = scmp.eq.s32.totalorder %s22, 1
      %p159 = por %p157, %p158
      %p160 = scmp.ne.s32.totalorder %s151, %s152
      %p161 = scmp.eq.s32.totalorder %s22, 0
      %p162 = por %p160, %p161
      %p163 = scmp.ne.s32.totalorder %s151, %s152
      %p164 = scmp.eq.s32.totalorder %s23, 1
      %p165 = por %p163, %p164
      %p167 = scmp.ne.s32.totalorder %s152, %s166
      %p168 = scmp.eq.s32.totalorder %s23, 0
      %p169 = por %p167, %p168
      %s171 = sadd.s32 %s170, 1
      %p174 = scmp.eq.s32.totalorder %s17, 1
      %p175 = scmp.ne.s32.totalorder %s170, %s172
      %p176 = scmp.eq.s32.totalorder %s17, 0
      %p177 = por %p175, %p176
      %p178 = scmp.ne.s32.totalorder %s170, %s172
      %p179 = scmp.eq.s32.totalorder %s22, 1
      %p180 = por %p178, %p179
      %p181 = scmp.ne.s32.totalorder %s172, %s173
      %p182 = scmp.eq.s32.totalorder %s22, 0
      %p183 = por %p181, %p182
      %p184 = scmp.ne.s32.totalorder %s172, %s173
      %p185 = scmp.eq.s32.totalorder %s23, 1
      %p186 = por %p184, %p185
      %p188 = scmp.ne.s32.totalorder %s173, %s187
      %p189 = scmp.eq.s32.totalorder %s23, 0
      %p190 = por %p188, %p189
      %s191 = ssub.s32 %s25, %s32
      %p192 = scmp.eq.s32.totalorder %s191, 0
      %s194 = sadd.s32 %s193, 1
      %s195 = scalar_select %p192, %s193, %s194
      %p198 = pneg %p192
      %p199 = scmp.eq.s32.totalorder %s17, 1
      %p200 = por %p198, %p199
      %p201 = scmp.ne.s32.totalorder %s193, %s196
      %p202 = scmp.eq.s32.totalorder %s17, 0
      %p203 = por %p201, %p202
      %p204 = scmp.ne.s32.totalorder %s193, %s196
      %p205 = scmp.eq.s32.totalorder %s22, 1
      %p206 = por %p204, %p205
      %p207 = scmp.ne.s32.totalorder %s196, %s197
      %p208 = scmp.eq.s32.totalorder %s22, 0
      %p209 = por %p207, %p208
      %p210 = scmp.ne.s32.totalorder %s196, %s197
      %p211 = scmp.eq.s32.totalorder %s23, 1
      %p212 = por %p210, %p211
      %p214 = scmp.ne.s32.totalorder %s197, %s213
      %p215 = scmp.eq.s32.totalorder %s23, 0
      %p216 = por %p214, %p215
      %s217 = ssub.s32 %s24, %s36
      %p218 = scmp.eq.s32.totalorder %s217, 0
      %s220 = sadd.s32 %s219, 1
      %s221 = scalar_select %p218, %s219, %s220
      %p224 = pneg %p218
      %p225 = scmp.eq.s32.totalorder %s17, 1
      %p226 = por %p224, %p225
      %p227 = scmp.ne.s32.totalorder %s219, %s222
      %p228 = scmp.eq.s32.totalorder %s17, 0
      %p229 = por %p227, %p228
      %p230 = scmp.ne.s32.totalorder %s219, %s222
      %p231 = scmp.eq.s32.totalorder %s22, 1
      %p232 = por %p230, %p231
      %p233 = scmp.ne.s32.totalorder %s222, %s223
      %p234 = scmp.eq.s32.totalorder %s22, 0
      %p235 = por %p233, %p234
      %p236 = scmp.ne.s32.totalorder %s222, %s223
      %p237 = scmp.eq.s32.totalorder %s23, 1
      %p238 = por %p236, %p237
      %p240 = scmp.ne.s32.totalorder %s223, %s239
      %p241 = scmp.eq.s32.totalorder %s23, 0
      %p242 = por %p240, %p241
      %p243 = scmp.le.s32.totalorder 1, %s17
      %p244 = scmp.lt.s32.totalorder %s17, 3
      %p245 = pnand %p243, %p244
      %p246 = pneg %p245
      // Predicated region
      $region9: #{tpu_custom_call.1} parent=5 // pred_check
        _
      $region10: #{tpu_custom_call.1} parent=5 // pred_check_branch
        %248 = sbr.rel (%p245) target = $region12
      $region11: #{tpu_custom_call.1} parent=5 // pred_region
        %s249 = ssub.s32 %s17, 1
        // Predicated region
        $region13: #{tpu_custom_call.1} parent=11 // pred_check
          %p250 = pneg %p78
        $region14: #{tpu_custom_call.1} parent=11 // pred_check_branch
          %252 = sbr.rel (%p250) target = $region16
        $region15: #{tpu_custom_call.1} parent=11 // pred_region
          _
        $region16: #{tpu_custom_call.1} parent=11 // pred_fallthru
          _
        // Predicated region
        $region17: #{tpu_custom_call.1} parent=11 // pred_check
          %p253 = pneg %p99
        $region18: #{tpu_custom_call.1} parent=11 // pred_check_branch
          %255 = sbr.rel (%p253) target = $region20
        $region19: #{tpu_custom_call.1} parent=11 // pred_region
          _
        $region20: #{tpu_custom_call.1} parent=11 // pred_fallthru
          _
        // Predicated region
        $region21: #{tpu_custom_call.1} parent=11 // pred_check
          %p256 = pneg %p120
        $region22: #{tpu_custom_call.1} parent=11 // pred_check_branch
          %258 = sbr.rel (%p256) target = $region24
        $region23: #{tpu_custom_call.1} parent=11 // pred_region
          _
        $region24: #{tpu_custom_call.1} parent=11 // pred_fallthru
          _
        // Predicated region
        $region25: #{tpu_custom_call.1} parent=11 // pred_check
          %p259 = pneg %p141
        $region26: #{tpu_custom_call.1} parent=11 // pred_check_branch
          %261 = sbr.rel (%p259) target = $region28
        $region27: #{tpu_custom_call.1} parent=11 // pred_region
          _
        $region28: #{tpu_custom_call.1} parent=11 // pred_fallthru
          _
        // Predicated region
        $region29: #{tpu_custom_call.1} parent=11 // pred_check
          %p262 = pneg %p162
        $region30: #{tpu_custom_call.1} parent=11 // pred_check_branch
          %264 = sbr.rel (%p262) target = $region32
        $region31: #{tpu_custom_call.1} parent=11 // pred_region
          _
        $region32: #{tpu_custom_call.1} parent=11 // pred_fallthru
          _
        // Predicated region
        $region33: #{tpu_custom_call.1} parent=11 // pred_check
          %p265 = pneg %p183
        $region34: #{tpu_custom_call.1} parent=11 // pred_check_branch
          %267 = sbr.rel (%p265) target = $region36
        $region35: #{tpu_custom_call.1} parent=11 // pred_region
          _
        $region36: #{tpu_custom_call.1} parent=11 // pred_fallthru
          _
        // Predicated region
        $region37: #{tpu_custom_call.1} parent=11 // pred_check
          %p268 = pneg %p209
        $region38: #{tpu_custom_call.1} parent=11 // pred_check_branch
          %270 = sbr.rel (%p268) target = $region40
        $region39: #{tpu_custom_call.1} parent=11 // pred_region
          %p271 = scmp.lt.s32.totalorder %s27, 0
          %s272 = scalar_select %p271, %s27, 0
          %s273 = smul.addr %s272, 4
          %s274 = scalar_lea.vmem %s7, %s273
        $region40: #{tpu_custom_call.1} parent=11 // pred_fallthru
          _
      $region12: #{tpu_custom_call.1} parent=5 // pred_fallthru
        _
      %p275 = scmp.lt.s32.totalorder %s17, 2
      // Predicated region
      $region41: #{tpu_custom_call.1} parent=5 // pred_check
        %p276 = pneg %p275
      $region42: #{tpu_custom_call.1} parent=5 // pred_check_branch
        %278 = sbr.rel (%p276) target = $region44
      $region43: #{tpu_custom_call.1} parent=5 // pred_region
        // Predicated region
        $region45: #{tpu_custom_call.1} parent=43 // pred_check
          %p279 = pneg %p51
        $region46: #{tpu_custom_call.1} parent=43 // pred_check_branch
          %281 = sbr.rel (%p279) target = $region48
        $region47: #{tpu_custom_call.1} parent=43 // pred_region
          %p282 = scmp.lt.s32.totalorder %s24, 1
          %s283 = scalar_select %p282, %s24, 1
          %p284 = scmp.lt.s32.totalorder %s25, 0
          %s285 = scalar_select %p284, %s25, 0
          %s286 = smul.addr %s285, 2
          %s287 = smul.addr %s283, 2
          %s288 = sadd.s32 %s286, %s287
          %s289 = smul.addr %s288, 4
          %s290 = scalar_lea.vmem %s0, %s289
        $region48: #{tpu_custom_call.1} parent=43 // pred_fallthru
          _
      $region44: #{tpu_custom_call.1} parent=5 // pred_fallthru
        _
      %p291 = scmp.le.s32.totalorder 1, %s17
      %p292 = scmp.lt.s32.totalorder %s17, 3
      %p293 = pnand %p291, %p292
      %p294 = pneg %p293
      // Predicated region
      $region49: #{tpu_custom_call.1} parent=5 // pred_check
        _
      $region50: #{tpu_custom_call.1} parent=5 // pred_check_branch
        %296 = sbr.rel (%p293) target = $region52
      $region51: #{tpu_custom_call.1} parent=5 // pred_region
        %s297 = ssub.s32 %s17, 1
        %p298 = scmp.lt.s32.totalorder %s26, 1
        %s299 = scalar_select %p298, %s26, 1
        %p300 = scmp.lt.s32.totalorder %s27, 0
        %s301 = scalar_select %p300, %s27, 0
        %s302 = smul.addr %s301, 2
        %s303 = smul.addr %s299, 2
        %s304 = sadd.s32 %s302, %s303
        %s305 = smul.addr %s304, 4
        %s306 = scalar_lea.vmem %s0, %s305
        %p307 = pneg %p57
        %p308 = pneg %p54
        %p309 = pneg %p78
        %p310 = pneg %p75
        %p311 = pneg %p99
        %p312 = pneg %p96
        %p313 = pneg %p120
        %p314 = pneg %p117
        %p315 = pneg %p141
        %p316 = pneg %p138
        %p317 = pneg %p162
        %p318 = pneg %p159
        %p319 = pneg %p183
        %p320 = pneg %p180
        %p321 = scmp.lt.s32.totalorder %s27, 0
        %s322 = scalar_select %p321, %s27, 0
        %s323 = smul.addr %s322, 4
        %s324 = scalar_lea.vmem %s7, %s323
        %p325 = pneg %p209
        %p326 = pneg %p206
        %p327 = pneg %p235
        %p328 = pneg %p232
        %s329 = sand.u32 %s222, 1
        %s330 = scalar_lea.sflag [#allocation3], %s329
        %s331 = sand.u32 %s222, 1
        %s332 = scalar_lea.vmem [#allocation2], %s331
        %p333 = scmp.lt.s32.totalorder %s26, 1
        %s334 = scalar_select %p333, %s26, 1
        %p335 = scmp.lt.s32.totalorder %s27, 0
        %s336 = scalar_select %p335, %s27, 0
        %s337 = smul.addr %s336, 2
        %s338 = smul.addr %s334, 2
        %s339 = sadd.s32 %s337, %s338
        %s340 = smul.addr %s339, 4
        %s341 = scalar_lea.vmem %s0, %s340
        %p342 = scmp.lt.s32.totalorder %s27, 0
        %s343 = scalar_select %p342, %s27, 0
        %s344 = smul.addr %s343, 4
        %s345 = scalar_lea.vmem %s7, %s344
        %v347 = vld [vmem:[%s341] sm:$0xff]
        %v348 = vld [vmem:[%s1] sm:$0x3]
        %v349 = vld [vmem:[%s2] sm:$0x3]
        %v351 = vcombine.high %v347, %v347
        %vm353 = vcmask 1043456
        %v354 = vsel %vm353, %v347, 0.0
        %vm355 = vcmask 519168
        %v356 = vsel %vm355, %v351, 0.0
        %v357 = vadd.f32 %v354, %v356
        %358 = vadd.xlane.f32.xlu0 %v357
        %v359 = vpop.xlane.xlu0 %358
        %v360 = vrcp.pop 192.0
        %v361 = vmul.f32 %v359, %v360
        %v364 = vunpack.c.l.s4 839922192
        %v365 = vunpack.c.0.s8 %v364
        %v366 = vlaneseq
        %v367 = vshrl.u32 %v366, 7
        %v368 = vsub.s32 %v365, %v367
        %v369 = vrot.slane %v361, %v368
        %v371 = vsub.f32 %v347, %v369
        %v372 = vmul.f32 %v371, %v371
        %v374 = vcombine.high %v372, %v372
        %v376 = vsel %vm353, %v372, 0.0
        %v377 = vsel %vm355, %v374, 0.0
        %v378 = vadd.f32 %v376, %v377
        %379 = vadd.xlane.f32.xlu0 %v378
        %v380 = vpop.xlane.xlu0 %379
        %v381 = vmul.f32 %v380, %v360
        %v382 = vadd.f32 %v381, 1e-05
        %v383 = vrsqrt.pop %v382
        %v386 = vunpack.c.l.s4 839922192
        %v387 = vunpack.c.0.s8 %v386
        %v388 = vlaneseq
        %v389 = vshrl.u32 %v388, 7
        %v390 = vsub.s32 %v387, %v389
        %v391 = vrot.slane %v383, %v390
        %v393 = vmul.f32 %v371, %v391
        %v395 = vlaneseq
        %v396 = vshrl.u32 %v395, 7
        %v397 = vsub.s32 0, %v396
        %v398 = vrot.slane %v348, %v397
        %v399 = vlaneseq
        %v400 = vshrl.u32 %v399, 7
        %v401 = vsub.s32 1, %v400
        %v402 = vrot.slane %v348, %v401
        %v403 = vcombine.low %v398, %v402
        %v405 = vmul.f32 %v393, %v403
        %v407 = vlaneseq
        %v408 = vshrl.u32 %v407, 7
        %v409 = vsub.s32 0, %v408
        %v410 = vrot.slane %v349, %v409
        %v411 = vlaneseq
        %v412 = vshrl.u32 %v411, 7
        %v413 = vsub.s32 1, %v412
        %v414 = vrot.slane %v349, %v413
        %v415 = vcombine.low %v410, %v414
        %v417 = vadd.f32 %v405, %v415
        %v419 = vcombine.high %v417, %v417
        %v421 = vpack.c.bf16 %v417, %v417
        %v422 = vpack.c.bf16 %v419, %v419
        %v423 = vld [vmem:[%s3] sm:$0xf]
        %v424 = vld [vmem:[%s3 + $0x4] sm:$0xf]
        %v425 = vld [vmem:[%s3 + $0x8] sm:$0xf]
        %v426 = vld [vmem:[%s3 + $0xc] sm:$0xf]
        %v427 = vld [vmem:[%s3 + $0x10] sm:$0xf]
        %v428 = vld [vmem:[%s3 + $0x14] sm:$0xf]
        %v429 = vld [vmem:[%s3 + $0x18] sm:$0xf]
        %v430 = vld [vmem:[%s3 + $0x1c] sm:$0xf]
        %v431 = vld [vmem:[%s3 + $0x20] sm:$0xf]
        %v432 = vld [vmem:[%s3 + $0x24] sm:$0xf]
        %v433 = vld [vmem:[%s3 + $0x28] sm:$0xf]
        %v434 = vld [vmem:[%s3 + $0x2c] sm:$0xf]
        %v435 = vld [vmem:[%s3 + $0x30] sm:$0xf]
        %v436 = vld [vmem:[%s3 + $0x34] sm:$0xf]
        %v437 = vld [vmem:[%s3 + $0x38] sm:$0xf]
        %v438 = vld [vmem:[%s3 + $0x3c] sm:$0xf]
        %v439 = vld [vmem:[%s3 + $0x40] sm:$0xf]
        %v440 = vld [vmem:[%s3 + $0x44] sm:$0xf]
        %v441 = vld [vmem:[%s3 + $0x48] sm:$0xf]
        %v442 = vld [vmem:[%s3 + $0x4c] sm:$0xf]
        %v443 = vld [vmem:[%s3 + $0x50] sm:$0xf]
        %v444 = vld [vmem:[%s3 + $0x54] sm:$0xf]
        %v445 = vld [vmem:[%s3 + $0x58] sm:$0xf]
        %v446 = vld [vmem:[%s3 + $0x5c] sm:$0xf]
        %v447 = vld [vmem:[%s4] sm:$0x1]
        %v449 = vlaneseq
        %v450 = vshrl.u32 %v449, 7
        %v451 = vsub.s32 0, %v450
        %v452 = vrot.slane %v447, %v451
        %v478 = vunpack.c.l.b16 %v423
        %v479 = vunpack.c.l.b16 %v424
        %v480 = vunpack.c.l.b16 %v425
        %v481 = vunpack.c.l.b16 %v426
        %v482 = vunpack.c.l.b16 %v427
        %v483 = vunpack.c.l.b16 %v428
        %v484 = vunpack.c.l.b16 %v429
        %v485 = vunpack.c.l.b16 %v430
        %v486 = vunpack.c.l.b16 %v431
        %v487 = vunpack.c.l.b16 %v432
        %v488 = vunpack.c.l.b16 %v433
        %v489 = vunpack.c.l.b16 %v434
        %v490 = vunpack.c.l.b16 %v435
        %v491 = vunpack.c.l.b16 %v436
        %v492 = vunpack.c.l.b16 %v437
        %v493 = vunpack.c.l.b16 %v438
        %v494 = vunpack.c.l.b16 %v439
        %v495 = vunpack.c.l.b16 %v440
        %v496 = vunpack.c.l.b16 %v441
        %v497 = vunpack.c.l.b16 %v442
        %v498 = vunpack.c.l.b16 %v443
        %v499 = vunpack.c.l.b16 %v444
        %v500 = vunpack.c.l.b16 %v445
        %v501 = vunpack.c.l.b16 %v446
        %v502 = vpack.c.b16 %v479, %v478
        %v503 = vpack.c.b16 %v481, %v480
        %v504 = vpack.c.b16 %v483, %v482
        %v505 = vpack.c.b16 %v485, %v484
        %v506 = vpack.c.b16 %v487, %v486
        %v507 = vpack.c.b16 %v489, %v488
        %v508 = vpack.c.b16 %v491, %v490
        %v509 = vpack.c.b16 %v493, %v492
        %v510 = vpack.c.b16 %v495, %v494
        %v511 = vpack.c.b16 %v497, %v496
        %v512 = vpack.c.b16 %v499, %v498
        %v513 = vpack.c.b16 %v501, %v500
        %vm526 = vcmask 523264
        %v528 = vsel %vm526, %v422, 0
        %530 = vmatprep.subr.bf16.mxu0 0
        %531 = vmatpush1.bf16.msra.mxu0 %v502
        %532 = vmatprep.subr.bf16.mxu0 0
        %533 = vmatpush1.bf16.msra.mxu0 %v503
        %534 = vmatprep.subr.bf16.mxu0 0
        %535 = vmatpush1.bf16.msra.mxu0 %v504
        %536 = vmatprep.subr.bf16.mxu0 0
        %537 = vmatpush1.bf16.msra.mxu0 %v505
        %538 = vmatprep.subr.bf16.mxu0 0
        %539 = vmatpush1.bf16.msra.mxu0 %v506
        %540 = vmatprep.subr.bf16.mxu0 0
        %541 = vmatpush1.bf16.msra.mxu0 %v507
        %542 = vmatprep.subr.bf16.mxu0 0
        %543 = vmatpush1.bf16.msra.mxu0 %v508
        %544 = vmatprep.subr.bf16.mxu0 0
        %545 = vmatpush1.bf16.msra.mxu0 %v509
        %546 = vmatprep.subr.bf16.mxu0 0
        %547 = vmatpush1.bf16.msra.mxu0 %v510
        %548 = vmatprep.subr.bf16.mxu0 0
        %549 = vmatpush1.bf16.msra.mxu0 %v511
        %550 = vmatprep.subr.bf16.mxu0 0
        %551 = vmatpush1.bf16.msra.mxu0 %v512
        %552 = vmatprep.subr.bf16.mxu0 0
        %553 = vmatpush1.bf16.msra.mxu0 %v513
        %554 = vmatprep.subr.bf16.mxu0 0
        %555 = vmatpush1.bf16.msra.mxu0 0
        %556 = vmatprep.subr.bf16.mxu0 0
        %557 = vmatpush1.bf16.msra.mxu0 0
        %558 = vmatprep.subr.bf16.mxu0 0
        %559 = vmatpush1.bf16.msra.mxu0 0
        %560 = vmatprep.subr.bf16.mxu0 0
        %561 = vmatpush1.bf16.msra.mxu0 0
        %562 = vmatprep.mubr.bf16.mxu0 %v528
        %563 = vmatmul.mubr.bf16.gmra.mrb[0].mxu0 %v421
        %v564 = vpop.f32.mrb[0].mxu0
        %v565 = vadd.f32 %v452, %v564
        %v566 = vpop.f32.mrb[0].mxu0
        %v567 = vpop.f32.mrb[0].mxu0
        %v568 = vpop.f32.mrb[0].mxu0
        %569 = vdwg.mxu0
        %v570 = vld [vmem:[%s5] sm:$0x1]
        %v571 = vld [vmem:[%s6] sm:$0x1]
        %vm572 = vcmask 257024
        %v573 = vsel %vm572, %v565, 0.0
        %574 = vadd.xlane.f32.xlu0 %v573
        %v575 = vpop.xlane.xlu0 %574
        %v576 = vrcp.pop 32.0
        %v577 = vmul.f32 %v575, %v576
        %v578 = vsub.f32 %v565, %v577
        %v579 = vmul.f32 %v578, %v578
        %v580 = vsel %vm572, %v579, 0.0
        %581 = vadd.xlane.f32.xlu0 %v580
        %v582 = vpop.xlane.xlu0 %581
        %v583 = vmul.f32 %v582, %v576
        %v584 = vadd.f32 %v583, 1e-05
        %v585 = vrsqrt.pop %v584
        %v586 = vmul.f32 %v578, %v585
        %v588 = vlaneseq
        %v589 = vshrl.u32 %v588, 7
        %v590 = vsub.s32 0, %v589
        %v591 = vrot.slane %v570, %v590
        %v593 = vmul.f32 %v586, %v591
        %v595 = vlaneseq
        %v596 = vshrl.u32 %v595, 7
        %v597 = vsub.s32 0, %v596
        %v598 = vrot.slane %v571, %v597
        %v600 = vadd.f32 %v593, %v598
        %v601 = vld [vmem:[%s345] sm:$0xf]
        %v602 = vadd.f32 %v600, %v601
        %p603 = scmp.eq.s32.totalorder %s27, 0
        // Predicated region
        $region53: #{tpu_custom_call.1} parent=51 // pred_check
          %p604 = pneg %p603
        $region54: #{tpu_custom_call.1} parent=51 // pred_check_branch
          %606 = sbr.rel (%p604) target = $region56
        $region55: #{tpu_custom_call.1} parent=51 // pred_region
          %vm607 = vcmask 253952
          %608 = vst.msk [vmem:[%s332] sm:$0x1] %vm607, 0.0
        $region56: #{tpu_custom_call.1} parent=51 // pred_fallthru
          _
        %v609 = vld [vmem:[%s332] sm:$0x1]
        %v610 = vsel %vm572, %v602, 0.0
        %v611 = vrot.slane %v610, 4
        %v612 = vadd.f32 %v610, %v611
        %v613 = vrot.slane %v612, 2
        %v614 = vadd.f32 %v612, %v613
        %v615 = vrot.slane %v614, 1
        %v616 = vadd.f32 %v614, %v615
        %v617 = vadd.f32 %v609, %v616
        %vm618 = vcmask 253952
        %619 = vst.msk [vmem:[%s332] sm:$0x1] %vm618, %v617
        // Predicated region
        $region57: #{tpu_custom_call.1} parent=51 // pred_check
          %p620 = pneg %p603
        $region58: #{tpu_custom_call.1} parent=51 // pred_check_branch
          %622 = sbr.rel (%p620) target = $region60
        $region59: #{tpu_custom_call.1} parent=51 // pred_region
          %v623 = vld [vmem:[%s332] sm:$0x1]
          %v624 = vmul.f32 %v623, 0.25
          %625 = vst.msk [vmem:[%s332] sm:$0x1] %vm618, %v624
        $region60: #{tpu_custom_call.1} parent=51 // pred_fallthru
          _
        %s626 = sand.u32 %s222, 1
        %s627 = scalar_lea.sflag [#allocation3], %s626
        %s628 = sand.u32 %s222, 1
        %s629 = scalar_lea.vmem [#allocation2], %s628
        // Predicated region
        $region61: #{tpu_custom_call.1} parent=51 // pred_check
          %p630 = pneg %p232
        $region62: #{tpu_custom_call.1} parent=51 // pred_check_branch
          %632 = sbr.rel (%p630) target = $region64
        $region63: #{tpu_custom_call.1} parent=51 // pred_region
          %s634 = ssub.s32 16, 16
          %635 = vsyncadd %s627, %s634
          %s636 = smul.addr %s26, 16
          %s637 = scalar_lea.hbm %s8, %s636
          %s639 = sshll.u32 %s629, 4
          %s640 = int_to_ptr.vmem [resolvable:$true] %s639
          %642 = dma.vmem_to_hbm [thread:$0]  %s640, 16, %s637, %s627
        $region64: #{tpu_custom_call.1} parent=51 // pred_fallthru
          _
      $region52: #{tpu_custom_call.1} parent=5 // pred_fallthru
        _
      %p643 = scmp.le.s32.totalorder 2, %s17
      // Predicated region
      $region65: #{tpu_custom_call.1} parent=5 // pred_check
        %p644 = pneg %p643
      $region66: #{tpu_custom_call.1} parent=5 // pred_check_branch
        %646 = sbr.rel (%p644) target = $region68
      $region67: #{tpu_custom_call.1} parent=5 // pred_region
        %s647 = ssub.s32 %s17, 2
        // Predicated region
        $region69: #{tpu_custom_call.1} parent=67 // pred_check
          %p648 = pneg %p238
        $region70: #{tpu_custom_call.1} parent=67 // pred_check_branch
          %650 = sbr.rel (%p648) target = $region72
        $region71: #{tpu_custom_call.1} parent=67 // pred_region
          %s651 = sand.u32 %s223, 1
          %s652 = scalar_lea.sflag [#allocation3], %s651
          %s653 = sand.u32 %s223, 1
          %s654 = scalar_lea.vmem [#allocation2], %s653
          %655 = dma.done %s652, 16
        $region72: #{tpu_custom_call.1} parent=67 // pred_fallthru
          _
      $region68: #{tpu_custom_call.1} parent=5 // pred_fallthru
        _
    $region6: #{tpu_custom_call.1} parent=1 // loop_footer
      %s21 = sadd.s32 1, %s17
    $region7: #{tpu_custom_call.1} parent=1 // loop_footer_branch
      %16 = sbr.rel target = $region3
    $region8: #{tpu_custom_call.1} parent=1 // loop_exit
      _
    %656 = vsyncpa [#allocation3], 1
    %s657 = scalar_lea.sflag [#allocation3], 1
    %658 = vsyncpa %s657, 1

</llo_original>
